<compile_context>
chip_gen: v6e
topology: v6e:2x2x1
jax: 0.10.0
libtpu: 0.0.40
codegen_flags: <defaults>
</compile_context>

<pallas_src>
import jax
import jax.numpy as jnp
import numpy as np
from jax.experimental import pallas as pl
from jax.experimental.pallas import tpu as pltpu

_SUB = 16  # bf16 sublane packing: keep batch blocks 16-aligned.


def _round_up(a, b):
    return (a + b - 1) // b * b


def mycnn_kernel(x_ref, w1_ref, b1_ref, w2_ref, b2_ref,
                 wf1_ref, bf1_ref, wf2_ref, bf2_ref, out_ref):
    f32 = jnp.float32
    bf16 = jnp.bfloat16
    x = x_ref[...]                                                           # (Nb, 68) bf16

    # conv1: even|odd pool phases fused in ONE MXU pass, +bias, ReLU + MaxPool(2,2).
    y1 = jnp.dot(x, w1_ref[...], preferred_element_type=f32) + b1_ref[...]  # (Nb, 512) f32
    p1 = jnp.maximum(jnp.maximum(y1[:, :256], y1[:, 256:]), 0.0).astype(bf16)  # (Nb, 256)

    # conv2: same trick (padded K rows of W2 are zero, padded p1 lanes are zero).
    y2 = jnp.dot(p1, w2_ref[...], preferred_element_type=f32) + b2_ref[...]  # (Nb, 512) f32
    p2 = jnp.maximum(jnp.maximum(y2[:, :256], y2[:, 256:]), 0.0).astype(bf16)  # (Nb, 256)

    # fc1 + ReLU (K padded 168->256, out padded 80->128; padded lanes stay 0).
    h = jnp.maximum(
        jnp.dot(p2, wf1_ref[...], preferred_element_type=f32) + bf1_ref[...],
        0.0).astype(bf16)                                                    # (Nb, 128)

    # fc2, out padded 5->128 for a lane-dense store (bf16 to halve the HBM write).
    out_ref[...] = (jnp.dot(h, wf2_ref[...], preferred_element_type=f32)
                    + bf2_ref[...]).astype(out_ref.dtype)                    # (Nb, 128)


def _conv_toeplitz(w, in_pos, out_pos, offset):
    """(Co,Ci,K) conv1d weight -> (Ci*in_pos, Co*out_pos) matrix producing the conv
    output at positions 2*m+offset (i.e. one MaxPool(2,2) phase)."""
    Co, Ci, K = w.shape
    ci = np.arange(Ci)[:, None, None, None]
    p = np.arange(in_pos)[None, :, None, None]
    co = np.arange(Co)[None, None, :, None]
    m = np.arange(out_pos)[None, None, None, :]
    k = p - (2 * m + offset)
    valid = (k >= 0) & (k < K)
    vals = w[co, ci, np.clip(k, 0, K - 1)]
    return np.where(valid, vals, 0.0).reshape(Ci * in_pos, Co * out_pos)


def _merge_halves(even, odd, rows_pad, half):
    r, c = even.shape
    out = np.zeros((rows_pad, 2 * half), np.float32)
    out[:r, :c] = even
    out[:r, half:half + c] = odd
    return out


def _bias_halves(b, rep, half):
    v = np.repeat(b, rep)
    out = np.zeros((1, 2 * half), np.float32)
    out[0, :v.size] = v
    out[0, half:half + v.size] = v
    return out


def _prepare_weights(params):
    """Host-side, one-time: restructure PyTorch weights into padded bf16 matmul
    operands so the kernel is exactly 4 aligned MXU matmuls."""
    w1, b1, w2, b2, wf1, bf1, wf2, bf2 = (np.asarray(p, np.float32) for p in params)

    # conv1: (Nb,68)@(68,512); each half = 6*32 = 192 features, padded to 256 lanes.
    W1 = _merge_halves(_conv_toeplitz(w1, 68, 32, 0),
                       _conv_toeplitz(w1, 68, 32, 1), 68, 256)
    B1 = _bias_halves(b1, 32, 256)

    # conv2: (Nb,256)@(256,512); each half = 12*14 = 168 features, padded to 256.
    W2 = _merge_halves(_conv_toeplitz(w2, 32, 14, 0),
                       _conv_toeplitz(w2, 32, 14, 1), 256, 256)
    B2 = _bias_halves(b2, 14, 256)

    # fc1: kernel feature layout (co*14 + m) == PyTorch flatten order; K 168->256, out 80->128.
    Wf1 = np.zeros((256, 128), np.float32)
    Wf1[:168, :80] = wf1.T
    Bf1 = np.zeros((1, 128), np.float32)
    Bf1[0, :80] = bf1

    # fc2: out padded 5->128 for a lane-dense store; slice [:, :5] outside the kernel.
    # TODO(synk): nn.Linear(128, 5) declares in_features=128 but fc1 only produces 80
    # features, so the literal PyTorch forward errors; we use wf2[:, :80] (same
    # semantics as the reference check).
    Wf2 = np.zeros((128, 128), np.float32)
    Wf2[:80, :5] = wf2[:, :80].T
    Bf2 = np.zeros((1, 128), np.float32)
    Bf2[0, :5] = bf2

    bf16, f32 = jnp.bfloat16, jnp.float32
    return (jnp.asarray(W1, bf16), jnp.asarray(B1, f32),
            jnp.asarray(W2, bf16), jnp.asarray(B2, f32),
            jnp.asarray(Wf1, bf16), jnp.asarray(Bf1, f32),
            jnp.asarray(Wf2, bf16), jnp.asarray(Bf2, f32))


def make_mycnn_forward(params, *, block_n=1024):
    """Returns a jitted forward(x) for x of shape (N, 1, 68).

    Weight restructuring runs once here (cached in the closure); block_n is the
    batch block size (sweep 512-1024 per chip)."""
    assert block_n % _SUB == 0
    weights = _prepare_weights(params)

    def full_spec(a):
        zeros = (0,) * a.ndim
        return pl.BlockSpec(a.shape, lambda i, _z=zeros: _z)

    @jax.jit
    def forward(x):
        N = x.shape[0]
        assert x.shape[1] * x.shape[2] == 68, "expected Conv1d input length 68"
        x2 = x.reshape(N, 68).astype(jnp.bfloat16)

        # Batch block: bf16-sublane aligned; use >=2 grid blocks when the batch is
        # big enough so both v7x TensorCores get work on the "parallel" batch axis.
        n_aligned = _round_up(N, _SUB)
        if n_aligned <= 2 * _SUB:
            Nb = n_aligned
        else:
            Nb = min(block_n, _round_up(-(-N // 2), _SUB))
        N_pad = _round_up(N, Nb)
        if N_pad != N:
            x2 = jnp.pad(x2, ((0, N_pad - N), (0, 0)))

        out = pl.pallas_call(
            mycnn_kernel,
            out_shape=jax.ShapeDtypeStruct((N_pad, 128), jnp.bfloat16),
            grid=(N_pad // Nb,),
            in_specs=[pl.BlockSpec((Nb, 68), lambda i: (i, 0))]
                     + [full_spec(w) for w in weights],
            out_specs=pl.BlockSpec((Nb, 128), lambda i: (i, 0)),
            compiler_params=pltpu.CompilerParams(
                dimension_semantics=("parallel",),
                vmem_limit_bytes=32 * 1024 * 1024),
        )(x2, *weights)

        return out[:N, :5].astype(jnp.float32)

    return forward


def reference_forward(x, params):
    """Pure-JAX f32 reference of the (fixed) PyTorch forward, for correctness check."""
    w1, b1, w2, b2, wf1, bf1, wf2, bf2 = params
    dn = ("NCH", "OIH", "NCH")
    y = jax.lax.conv_general_dilated(x, w1, (1,), "VALID", dimension_numbers=dn)
    y = jnp.maximum(y + b1[None, :, None], 0.0)
    y = jnp.max(y.reshape(y.shape[0], y.shape[1], -1, 2), axis=-1)
    y = jax.lax.conv_general_dilated(y, w2, (1,), "VALID", dimension_numbers=dn)
    y = jnp.maximum(y + b2[None, :, None], 0.0)
    y = jnp.max(y.reshape(y.shape[0], y.shape[1], -1, 2), axis=-1)
    y = y.reshape(y.shape[0], -1)                              # (N, 168)
    y = jnp.maximum(y @ wf1.T + bf1, 0.0)                      # (N, 80)
    return y @ wf2[:, :80].T + bf2                             # (N, 5)


def init_params(key):
    """Deterministic PyTorch-style uniform(-1/sqrt(fan_in), 1/sqrt(fan_in)) init."""
    ks = jax.random.split(key, 8)

    def u(k, shape, fan_in):
        bound = 1.0 / float(np.sqrt(fan_in))
        return jax.random.uniform(k, shape, jnp.float32, -bound, bound)

    w1 = u(ks[0], (6, 1, 5), 1 * 5)
    b1 = u(ks[1], (6,), 1 * 5)
    w2 = u(ks[2], (12, 6, 5), 6 * 5)
    b2 = u(ks[3], (12,), 6 * 5)
    wf1 = u(ks[4], (80, 12 * 14), 12 * 14)
    bf1 = u(ks[5], (80,), 12 * 14)
    wf2 = u(ks[6], (5, 128), 128)
    bf2 = u(ks[7], (5,), 128)
    return (w1, b1, w2, b2, wf1, bf1, wf2, bf2)


if __name__ == "__main__":
    key = jax.random.PRNGKey(0)
    pkey, xkey = jax.random.split(key)
    params = init_params(pkey)

    # Input length 68: conv1->64, pool->32, conv2->28, pool->14 => 12*14 = 168 flat.
    x = jax.random.normal(xkey, (2, 1, 68), dtype=jnp.float32)

    forward = make_mycnn_forward(params)
    out = jax.block_until_ready(forward(x))
    ref = jax.block_until_ready(reference_forward(x, params))

    # bf16 MXU operands (f32 accumulation) vs. f32 reference -> relaxed tolerance.
    np.testing.assert_allclose(np.asarray(out), np.asarray(ref), rtol=3e-2, atol=3e-2)

    print("KERNEL_OK")
</pallas_src>

<mosaic_0001>
module attributes {stable_mosaic.version = 11 : i64} {
  func.func @mycnn_kernel(%arg0: i32, %arg1: memref<16x68xbf16, #tpu.memory_space<vmem>>, %arg2: memref<68x512xbf16, #tpu.memory_space<vmem>>, %arg3: memref<1x512xf32, #tpu.memory_space<vmem>>, %arg4: memref<256x512xbf16, #tpu.memory_space<vmem>>, %arg5: memref<1x512xf32, #tpu.memory_space<vmem>>, %arg6: memref<256x128xbf16, #tpu.memory_space<vmem>>, %arg7: memref<1x128xf32, #tpu.memory_space<vmem>>, %arg8: memref<128x128xbf16, #tpu.memory_space<vmem>>, %arg9: memref<1x128xf32, #tpu.memory_space<vmem>>, %arg10: memref<16x128xbf16, #tpu.memory_space<vmem>>) attributes {dimension_semantics = [#tpu.dimension_semantics<parallel>], iteration_bounds = array<i64: 1>, scalar_prefetch = 0 : i64, scratch_operands = 0 : i64, tpu.core_type = #tpu.core_type<tc>, window_params = [{transform_indices = @transform_0, window_bounds = array<i64: 16, 68>}, {pipeline_mode = #tpu.pipeline_mode<synchronous>, transform_indices = @transform_1, window_bounds = array<i64: 68, 512>}, {pipeline_mode = #tpu.pipeline_mode<synchronous>, transform_indices = @transform_2, window_bounds = array<i64: 1, 512>}, {pipeline_mode = #tpu.pipeline_mode<synchronous>, transform_indices = @transform_3, window_bounds = array<i64: 256, 512>}, {pipeline_mode = #tpu.pipeline_mode<synchronous>, transform_indices = @transform_4, window_bounds = array<i64: 1, 512>}, {pipeline_mode = #tpu.pipeline_mode<synchronous>, transform_indices = @transform_5, window_bounds = array<i64: 256, 128>}, {pipeline_mode = #tpu.pipeline_mode<synchronous>, transform_indices = @transform_6, window_bounds = array<i64: 1, 128>}, {pipeline_mode = #tpu.pipeline_mode<synchronous>, transform_indices = @transform_7, window_bounds = array<i64: 128, 128>}, {pipeline_mode = #tpu.pipeline_mode<synchronous>, transform_indices = @transform_8, window_bounds = array<i64: 1, 128>}, {transform_indices = @transform_9, window_bounds = array<i64: 16, 128>}]} {
    %c0 = arith.constant 0 : index
    %c0_0 = arith.constant 0 : index
    %0 = vector.load %arg1[%c0, %c0_0] : memref<16x68xbf16, #tpu.memory_space<vmem>>, vector<16x68xbf16>
    %c0_1 = arith.constant 0 : index
    %c0_2 = arith.constant 0 : index
    %1 = vector.load %arg2[%c0_1, %c0_2] : memref<68x512xbf16, #tpu.memory_space<vmem>>, vector<68x512xbf16>
    %cst = arith.constant dense<0.000000e+00> : vector<16x512xf32>
    %2 = tpu.matmul %0, %1, %cst {dimension_numbers = #tpu.dot_dimension_numbers<[1], [0], [0], [1], [0, 0, 1, 1], [], []>} : vector<16x68xbf16>, vector<68x512xbf16>, vector<16x512xf32> -> vector<16x512xf32>
    %c0_3 = arith.constant 0 : index
    %c0_4 = arith.constant 0 : index
    %3 = vector.load %arg3[%c0_3, %c0_4] : memref<1x512xf32, #tpu.memory_space<vmem>>, vector<1x512xf32>
    %4 = vector.broadcast %3 : vector<1x512xf32> to vector<16x512xf32>
    %5 = arith.addf %2, %4 : vector<16x512xf32>
    %6 = vector.extract_strided_slice %5 {offsets = [0, 0], sizes = [16, 256], strides = [1, 1]} : vector<16x512xf32> to vector<16x256xf32>
    %7 = vector.extract_strided_slice %5 {offsets = [0, 256], sizes = [16, 256], strides = [1, 1]} : vector<16x512xf32> to vector<16x256xf32>
    %8 = arith.maximumf %6, %7 : vector<16x256xf32>
    %cst_5 = arith.constant 0.000000e+00 : f32
    %9 = vector.broadcast %cst_5 : f32 to vector<16x256xf32>
    %10 = arith.maximumf %8, %9 : vector<16x256xf32>
    %11 = arith.truncf %10 : vector<16x256xf32> to vector<16x256xbf16>
    %c0_6 = arith.constant 0 : index
    %c0_7 = arith.constant 0 : index
    %12 = vector.load %arg4[%c0_6, %c0_7] : memref<256x512xbf16, #tpu.memory_space<vmem>>, vector<256x512xbf16>
    %cst_8 = arith.constant dense<0.000000e+00> : vector<16x512xf32>
    %13 = tpu.matmul %11, %12, %cst_8 {dimension_numbers = #tpu.dot_dimension_numbers<[1], [0], [0], [1], [0, 0, 1, 1], [], []>} : vector<16x256xbf16>, vector<256x512xbf16>, vector<16x512xf32> -> vector<16x512xf32>
    %c0_9 = arith.constant 0 : index
    %c0_10 = arith.constant 0 : index
    %14 = vector.load %arg5[%c0_9, %c0_10] : memref<1x512xf32, #tpu.memory_space<vmem>>, vector<1x512xf32>
    %15 = vector.broadcast %14 : vector<1x512xf32> to vector<16x512xf32>
    %16 = arith.addf %13, %15 : vector<16x512xf32>
    %17 = vector.extract_strided_slice %16 {offsets = [0, 0], sizes = [16, 256], strides = [1, 1]} : vector<16x512xf32> to vector<16x256xf32>
    %18 = vector.extract_strided_slice %16 {offsets = [0, 256], sizes = [16, 256], strides = [1, 1]} : vector<16x512xf32> to vector<16x256xf32>
    %19 = arith.maximumf %17, %18 : vector<16x256xf32>
    %cst_11 = arith.constant 0.000000e+00 : f32
    %20 = vector.broadcast %cst_11 : f32 to vector<16x256xf32>
    %21 = arith.maximumf %19, %20 : vector<16x256xf32>
    %22 = arith.truncf %21 : vector<16x256xf32> to vector<16x256xbf16>
    %c0_12 = arith.constant 0 : index
    %c0_13 = arith.constant 0 : index
    %23 = vector.load %arg6[%c0_12, %c0_13] : memref<256x128xbf16, #tpu.memory_space<vmem>>, vector<256x128xbf16>
    %cst_14 = arith.constant dense<0.000000e+00> : vector<16x128xf32>
    %24 = tpu.matmul %22, %23, %cst_14 {dimension_numbers = #tpu.dot_dimension_numbers<[1], [0], [0], [1], [0, 0, 1, 1], [], []>} : vector<16x256xbf16>, vector<256x128xbf16>, vector<16x128xf32> -> vector<16x128xf32>
    %c0_15 = arith.constant 0 : index
    %c0_16 = arith.constant 0 : index
    %25 = vector.load %arg7[%c0_15, %c0_16] : memref<1x128xf32, #tpu.memory_space<vmem>>, vector<1x128xf32>
    %26 = vector.broadcast %25 : vector<1x128xf32> to vector<16x128xf32>
    %27 = arith.addf %24, %26 : vector<16x128xf32>
    %cst_17 = arith.constant 0.000000e+00 : f32
    %28 = vector.broadcast %cst_17 : f32 to vector<16x128xf32>
    %29 = arith.maximumf %27, %28 : vector<16x128xf32>
    %30 = arith.truncf %29 : vector<16x128xf32> to vector<16x128xbf16>
    %c0_18 = arith.constant 0 : index
    %c0_19 = arith.constant 0 : index
    %31 = vector.load %arg8[%c0_18, %c0_19] : memref<128x128xbf16, #tpu.memory_space<vmem>>, vector<128x128xbf16>
    %cst_20 = arith.constant dense<0.000000e+00> : vector<16x128xf32>
    %32 = tpu.matmul %30, %31, %cst_20 {dimension_numbers = #tpu.dot_dimension_numbers<[1], [0], [0], [1], [0, 0, 1, 1], [], []>} : vector<16x128xbf16>, vector<128x128xbf16>, vector<16x128xf32> -> vector<16x128xf32>
    %c0_21 = arith.constant 0 : index
    %c0_22 = arith.constant 0 : index
    %33 = vector.load %arg9[%c0_21, %c0_22] : memref<1x128xf32, #tpu.memory_space<vmem>>, vector<1x128xf32>
    %34 = vector.broadcast %33 : vector<1x128xf32> to vector<16x128xf32>
    %35 = arith.addf %32, %34 : vector<16x128xf32>
    %36 = arith.truncf %35 : vector<16x128xf32> to vector<16x128xbf16>
    %c0_23 = arith.constant 0 : index
    %c0_24 = arith.constant 0 : index
    %37 = vector.load %arg10[%c0_23, %c0_24] : memref<16x128xbf16, #tpu.memory_space<vmem>>, vector<16x128xbf16>
    tpu.vector_store %arg10[%c0_23, %c0_24], %36 {strides = array<i32>} : memref<16x128xbf16, #tpu.memory_space<vmem>>, vector<16x128xbf16>,
    return
  }
  func.func @transform_0(%arg0: i32) -> (i32, i32) {
    %c0_i32 = arith.constant 0 : i32
    %c0_i32_0 = arith.constant 0 : i32
    return %arg0, %c0_i32 : i32, i32
  }
  func.func @transform_1(%arg0: i32) -> (i32, i32) {
    %c0_i32 = arith.constant 0 : i32
    %c0_i32_0 = arith.constant 0 : i32
    %c0_i32_1 = arith.constant 0 : i32
    return %c0_i32, %c0_i32_0 : i32, i32
  }
  func.func @transform_2(%arg0: i32) -> (i32, i32) {
    %c0_i32 = arith.constant 0 : i32
    %c0_i32_0 = arith.constant 0 : i32
    %c0_i32_1 = arith.constant 0 : i32
    return %c0_i32, %c0_i32_0 : i32, i32
  }
  func.func @transform_3(%arg0: i32) -> (i32, i32) {
    %c0_i32 = arith.constant 0 : i32
    %c0_i32_0 = arith.constant 0 : i32
    %c0_i32_1 = arith.constant 0 : i32
    return %c0_i32, %c0_i32_0 : i32, i32
  }
  func.func @transform_4(%arg0: i32) -> (i32, i32) {
    %c0_i32 = arith.constant 0 : i32
    %c0_i32_0 = arith.constant 0 : i32
    %c0_i32_1 = arith.constant 0 : i32
    return %c0_i32, %c0_i32_0 : i32, i32
  }
  func.func @transform_5(%arg0: i32) -> (i32, i32) {
    %c0_i32 = arith.constant 0 : i32
    %c0_i32_0 = arith.constant 0 : i32
    %c0_i32_1 = arith.constant 0 : i32
    return %c0_i32, %c0_i32_0 : i32, i32
  }
  func.func @transform_6(%arg0: i32) -> (i32, i32) {
    %c0_i32 = arith.constant 0 : i32
    %c0_i32_0 = arith.constant 0 : i32
    %c0_i32_1 = arith.constant 0 : i32
    return %c0_i32, %c0_i32_0 : i32, i32
  }
  func.func @transform_7(%arg0: i32) -> (i32, i32) {
    %c0_i32 = arith.constant 0 : i32
    %c0_i32_0 = arith.constant 0 : i32
    %c0_i32_1 = arith.constant 0 : i32
    return %c0_i32, %c0_i32_0 : i32, i32
  }
  func.func @transform_8(%arg0: i32) -> (i32, i32) {
    %c0_i32 = arith.constant 0 : i32
    %c0_i32_0 = arith.constant 0 : i32
    %c0_i32_1 = arith.constant 0 : i32
    return %c0_i32, %c0_i32_0 : i32, i32
  }
  func.func @transform_9(%arg0: i32) -> (i32, i32) {
    %c0_i32 = arith.constant 0 : i32
    %c0_i32_0 = arith.constant 0 : i32
    return %arg0, %c0_i32 : i32, i32
  }
}

</mosaic_0001>

<llo_original>
// kernel: forward.1
$region0: #{forward.1}
  #allocation0 [shape = 'u32[]', space=smem, size = 0x4, offset = 0x4, fixed_abs, tag = 'smem constant byte address 0x4 - core index']
  #allocation1 [shape = 'u32[144,128]{1,0:T(1,128)}', space=vmem, size = 0x12000, scoped, tag = 'internal scratch']
  %s0 = inlined_call_operand.vmem [shape: bf16[16,68], index: 0, kind: input, shape index: {}]
  %s1 = inlined_call_operand.hbm [shape: bf16[68,512], index: 1, kind: input, shape index: {}]
  %s2 = inlined_call_operand.vmem [shape: f32[1,512], index: 2, kind: input, shape index: {}]
  %s3 = inlined_call_operand.hbm [shape: bf16[256,512], index: 3, kind: input, shape index: {}]
  %s4 = inlined_call_operand.vmem [shape: f32[1,512], index: 4, kind: input, shape index: {}]
  %s5 = inlined_call_operand.hbm [shape: bf16[256,128], index: 5, kind: input, shape index: {}]
  %s6 = inlined_call_operand.vmem [shape: f32[1,128], index: 6, kind: input, shape index: {}]
  %s7 = inlined_call_operand.hbm [shape: bf16[128,128], index: 7, kind: input, shape index: {}]
  %s8 = inlined_call_operand.vmem [shape: f32[1,128], index: 8, kind: input, shape index: {}]
  %s9 = inlined_call_operand.vmem [shape: bf16[16,128], index: 9, kind: output, shape index: {}]
  %s10 = sld [smem:[#allocation0]]
  $region62: #{forward.1} parent=0
    _
  %s12 = ssub.s32 1, %s10
  %s13 = scalar_select 0, %s12, %s10
  $region1: #{forward.1} parent=0
    #allocation2 [shape = 'u8[73728]{0}', space=vmem, size = 0x12000, scoped, tag = 'input window, operand 1, single buffered']
    #allocation3 [shape = 's32[1]{0}', space=sflag, size = 0x4, scoped, tag = 'scoped memory for forward.1']
    #allocation4 [shape = 'u8[262144]{0}', space=vmem, size = 0x40000, scoped, tag = 'input window, operand 3, single buffered']
    #allocation5 [shape = 's32[1]{0}', space=sflag, size = 0x4, scoped, tag = 'scoped memory for forward.1']
    #allocation6 [shape = 'u8[65536]{0}', space=vmem, size = 0x10000, scoped, tag = 'input window, operand 5, single buffered']
    #allocation7 [shape = 'u8[32768]{0}', space=vmem, size = 0x8000, scoped, tag = 'input window, operand 7, single buffered']
    #allocation8 [shape = 's32[1]{0}', space=sflag, size = 0x4, scoped, tag = 'scoped memory for forward.1']
    %14 = vsyncpa [#allocation3], 0
    %15 = vsyncpa [#allocation5], 0
    %16 = vsyncpa [#allocation8], 0
    // Predicated region
    $region2: #{forward.1} parent=1 // pred_check
      _
    $region3: #{forward.1} parent=1 // pred_check_branch
      %18 = sbr.rel (0) target = $region5
    $region4: #{forward.1} parent=1 // pred_region
      _
    $region5: #{forward.1} parent=1 // pred_fallthru
      _
    // Predicated region
    $region6: #{forward.1} parent=1 // pred_check
      _
    $region7: #{forward.1} parent=1 // pred_check_branch
      %20 = sbr.rel (0) target = $region9
    $region8: #{forward.1} parent=1 // pred_region
      %s22 = ssub.s32 2304, 2304
      %23 = vsyncadd [#allocation3], %s22
      %s24 = sshll.u32 [#allocation2], 4
      %s25 = int_to_ptr.vmem [resolvable:$true] %s24
      %30 = dma.hbm_to_vmem [thread:$0]  %s1, 2304, %s25, [#allocation3], 256, 256, 16
    $region9: #{forward.1} parent=1 // pred_fallthru
      _
    // Predicated region
    $region10: #{forward.1} parent=1 // pred_check
      _
    $region11: #{forward.1} parent=1 // pred_check_branch
      %32 = sbr.rel (0) target = $region13
    $region12: #{forward.1} parent=1 // pred_region
      _
    $region13: #{forward.1} parent=1 // pred_fallthru
      _
    // Predicated region
    $region14: #{forward.1} parent=1 // pred_check
      _
    $region15: #{forward.1} parent=1 // pred_check_branch
      %34 = sbr.rel (0) target = $region17
    $region16: #{forward.1} parent=1 // pred_region
      %s36 = ssub.s32 8192, 8192
      %37 = vsyncadd [#allocation5], %s36
      %s38 = sshll.u32 [#allocation4], 4
      %s39 = int_to_ptr.vmem [resolvable:$true] %s38
      %44 = dma.hbm_to_vmem [thread:$0]  %s3, 8192, %s39, [#allocation5], 256, 256, 16
    $region17: #{forward.1} parent=1 // pred_fallthru
      _
    // Predicated region
    $region18: #{forward.1} parent=1 // pred_check
      _
    $region19: #{forward.1} parent=1 // pred_check_branch
      %46 = sbr.rel (0) target = $region21
    $region20: #{forward.1} parent=1 // pred_region
      _
    $region21: #{forward.1} parent=1 // pred_fallthru
      _
    // Predicated region
    $region22: #{forward.1} parent=1 // pred_check
      _
    $region23: #{forward.1} parent=1 // pred_check_branch
      %48 = sbr.rel (0) target = $region25
    $region24: #{forward.1} parent=1 // pred_region
      %s50 = ssub.s32 2048, 2048
      %51 = vsyncadd [#allocation5], %s50
      %s52 = sshll.u32 [#allocation6], 4
      %s53 = int_to_ptr.vmem [resolvable:$true] %s52
      %58 = dma.hbm_to_vmem [thread:$0]  %s5, 2048, %s53, [#allocation5], 64, 64, 4
    $region25: #{forward.1} parent=1 // pred_fallthru
      _
    // Predicated region
    $region26: #{forward.1} parent=1 // pred_check
      _
    $region27: #{forward.1} parent=1 // pred_check_branch
      %60 = sbr.rel (0) target = $region29
    $region28: #{forward.1} parent=1 // pred_region
      _
    $region29: #{forward.1} parent=1 // pred_fallthru
      _
    // Predicated region
    $region30: #{forward.1} parent=1 // pred_check
      _
    $region31: #{forward.1} parent=1 // pred_check_branch
      %62 = sbr.rel (0) target = $region33
    $region32: #{forward.1} parent=1 // pred_region
      %s64 = ssub.s32 1024, 1024
      %65 = vsyncadd [#allocation8], %s64
      %s66 = sshll.u32 [#allocation7], 4
      %s67 = int_to_ptr.vmem [resolvable:$true] %s66
      %72 = dma.hbm_to_vmem [thread:$0]  %s7, 1024, %s67, [#allocation8], 64, 64, 4
    $region33: #{forward.1} parent=1 // pred_fallthru
      _
    // Predicated region
    $region34: #{forward.1} parent=1 // pred_check
      _
    $region35: #{forward.1} parent=1 // pred_check_branch
      %74 = sbr.rel (0) target = $region37
    $region36: #{forward.1} parent=1 // pred_region
      _
    $region37: #{forward.1} parent=1 // pred_fallthru
      _
    // Predicated region
    $region38: #{forward.1} parent=1 // pred_check
      _
    $region39: #{forward.1} parent=1 // pred_check_branch
      %76 = sbr.rel (0) target = $region41
    $region40: #{forward.1} parent=1 // pred_region
      %77 = dma.done [#allocation3], 2304
    $region41: #{forward.1} parent=1 // pred_fallthru
      _
    // Predicated region
    $region42: #{forward.1} parent=1 // pred_check
      _
    $region43: #{forward.1} parent=1 // pred_check_branch
      %79 = sbr.rel (0) target = $region45
    $region44: #{forward.1} parent=1 // pred_region
      %80 = dma.done [#allocation5], 8192
    $region45: #{forward.1} parent=1 // pred_fallthru
      _
    // Predicated region
    $region46: #{forward.1} parent=1 // pred_check
      _
    $region47: #{forward.1} parent=1 // pred_check_branch
      %82 = sbr.rel (0) target = $region49
    $region48: #{forward.1} parent=1 // pred_region
      %83 = dma.done [#allocation5], 2048
    $region49: #{forward.1} parent=1 // pred_fallthru
      _
    // Predicated region
    $region50: #{forward.1} parent=1 // pred_check
      _
    $region51: #{forward.1} parent=1 // pred_check_branch
      %85 = sbr.rel (0) target = $region53
    $region52: #{forward.1} parent=1 // pred_region
      %86 = dma.done [#allocation8], 1024
    $region53: #{forward.1} parent=1 // pred_fallthru
      _
    %v88 = vld [vmem:[%s0] sm:$0xf]
    %v89 = vld [vmem:[%s0 + $0x4] sm:$0xf]
    %v90 = vld [vmem:[#allocation2] sm:$0xff]
    %v91 = vld [vmem:[#allocation2 + $0x8] sm:$0xff]
    %v92 = vld [vmem:[#allocation2 + $0x10] sm:$0xff]
    %v93 = vld [vmem:[#allocation2 + $0x18] sm:$0xff]
    %v94 = vld [vmem:[#allocation2 + $0x20] sm:$0xff]
    %v95 = vld [vmem:[#allocation2 + $0x28] sm:$0xff]
    %v96 = vld [vmem:[#allocation2 + $0x30] sm:$0xff]
    %v97 = vld [vmem:[#allocation2 + $0x38] sm:$0xff]
    %v98 = vld [vmem:[#allocation2 + $0x40] sm:$0xff]
    %v99 = vld [vmem:[#allocation2 + $0x48] sm:$0xff]
    %v100 = vld [vmem:[#allocation2 + $0x50] sm:$0xff]
    %v101 = vld [vmem:[#allocation2 + $0x58] sm:$0xff]
    %v102 = vld [vmem:[#allocation2 + $0x60] sm:$0xff]
    %v103 = vld [vmem:[#allocation2 + $0x68] sm:$0xff]
    %v104 = vld [vmem:[#allocation2 + $0x70] sm:$0xff]
    %v105 = vld [vmem:[#allocation2 + $0x78] sm:$0xff]
    %v106 = vld [vmem:[#allocation2 + $0x80] sm:$0x33]
    %v107 = vld [vmem:[#allocation2 + $0x88] sm:$0x33]
    %v108 = vld [vmem:[%s2] sm:$0xf]
    %v110 = vlaneseq
    %v111 = vshrl.u32 %v110, 7
    %v112 = vsub.s32 0, %v111
    %v113 = vrot.slane %v108, %v112
    %v114 = vlaneseq
    %v115 = vshrl.u32 %v114, 7
    %v116 = vsub.s32 1, %v115
    %v117 = vrot.slane %v108, %v116
    %v118 = vlaneseq
    %v119 = vshrl.u32 %v118, 7
    %v120 = vsub.s32 2, %v119
    %v121 = vrot.slane %v108, %v120
    %v122 = vlaneseq
    %v123 = vshrl.u32 %v122, 7
    %v124 = vsub.s32 3, %v123
    %v125 = vrot.slane %v108, %v124
    %v132 = vunpack.c.l.b16 %v88
    %v133 = vunpack.c.l.b16 %v89
    %v134 = vpack.c.b16 %v133, %v132
    %v153 = vunpack.c.l.b16 %v90
    %v154 = vunpack.c.h.b16 %v90
    %v155 = vunpack.c.l.b16 %v91
    %v156 = vunpack.c.h.b16 %v91
    %v157 = vunpack.c.l.b16 %v92
    %v158 = vunpack.c.h.b16 %v92
    %v159 = vunpack.c.l.b16 %v93
    %v160 = vunpack.c.h.b16 %v93
    %v161 = vunpack.c.l.b16 %v94
    %v162 = vunpack.c.h.b16 %v94
    %v163 = vunpack.c.l.b16 %v95
    %v164 = vunpack.c.h.b16 %v95
    %v165 = vunpack.c.l.b16 %v96
    %v166 = vunpack.c.h.b16 %v96
    %v167 = vunpack.c.l.b16 %v97
    %v168 = vunpack.c.h.b16 %v97
    %v169 = vunpack.c.l.b16 %v98
    %v170 = vunpack.c.h.b16 %v98
    %v171 = vunpack.c.l.b16 %v99
    %v172 = vunpack.c.h.b16 %v99
    %v173 = vunpack.c.l.b16 %v100
    %v174 = vunpack.c.h.b16 %v100
    %v175 = vunpack.c.l.b16 %v101
    %v176 = vunpack.c.h.b16 %v101
    %v177 = vunpack.c.l.b16 %v102
    %v178 = vunpack.c.h.b16 %v102
    %v179 = vunpack.c.l.b16 %v103
    %v180 = vunpack.c.h.b16 %v103
    %v181 = vunpack.c.l.b16 %v104
    %v182 = vunpack.c.h.b16 %v104
    %v183 = vunpack.c.l.b16 %v105
    %v184 = vunpack.c.h.b16 %v105
    %v185 = vunpack.c.l.b16 %v106
    %v186 = vunpack.c.h.b16 %v106
    %v187 = vunpack.c.l.b16 %v107
    %v188 = vunpack.c.h.b16 %v107
    %v189 = vpack.c.b16 %v157, %v153
    %v190 = vpack.c.b16 %v158, %v154
    %v191 = vpack.c.b16 %v159, %v155
    %v192 = vpack.c.b16 %v160, %v156
    %v193 = vpack.c.b16 %v165, %v161
    %v194 = vpack.c.b16 %v166, %v162
    %v195 = vpack.c.b16 %v167, %v163
    %v196 = vpack.c.b16 %v168, %v164
    %v197 = vpack.c.b16 %v173, %v169
    %v198 = vpack.c.b16 %v174, %v170
    %v199 = vpack.c.b16 %v175, %v171
    %v200 = vpack.c.b16 %v176, %v172
    %v201 = vpack.c.b16 %v181, %v177
    %v202 = vpack.c.b16 %v182, %v178
    %v203 = vpack.c.b16 %v183, %v179
    %v204 = vpack.c.b16 %v184, %v180
    %v205 = vpack.c.b16 %v185, %v185
    %v206 = vpack.c.b16 %v186, %v186
    %v207 = vpack.c.b16 %v187, %v187
    %v208 = vpack.c.b16 %v188, %v188
    %vm225 = vcmask 556032
    %v227 = vsel %vm225, %v134, 0
    %vm229 = vcmask 1041408
    %v231 = vsel %vm229, %v205, 0
    %v234 = vsel %vm229, %v206, 0
    %v237 = vsel %vm229, %v207, 0
    %v240 = vsel %vm229, %v208, 0
    %242 = vmatprep.subr.bf16.mxu0 0
    %243 = vmatpush1.bf16.msra.mxu0 0
    %244 = vmatprep.subr.bf16.mxu0 0
    %245 = vmatpush1.bf16.msra.mxu0 0
    %246 = vmatprep.subr.bf16.mxu0 0
    %247 = vmatpush1.bf16.msra.mxu0 0
    %248 = vmatprep.subr.bf16.mxu0 %v234
    %249 = vmatpush1.bf16.msra.mxu0 %v231
    %250 = vmatprep.subr.bf16.mxu0 %v202
    %251 = vmatpush1.bf16.msra.mxu0 %v201
    %252 = vmatprep.subr.bf16.mxu0 %v198
    %253 = vmatpush1.bf16.msra.mxu0 %v197
    %254 = vmatprep.subr.bf16.mxu0 %v194
    %255 = vmatpush1.bf16.msra.mxu0 %v193
    %256 = vmatprep.subr.bf16.mxu0 %v190
    %257 = vmatpush1.bf16.msra.mxu0 %v189
    %258 = vmatprep.subr.bf16.mxu0 0
    %259 = vmatpush2.bf16.msra.mxu0 0
    %260 = vmatprep.subr.bf16.mxu0 0
    %261 = vmatpush2.bf16.msra.mxu0 0
    %262 = vmatprep.subr.bf16.mxu0 0
    %263 = vmatpush2.bf16.msra.mxu0 0
    %264 = vmatprep.subr.bf16.mxu0 0
    %265 = vmatpush2.bf16.msra.mxu0 0
    %266 = vmatprep.subr.bf16.mxu0 0
    %267 = vmatpush2.bf16.msra.mxu0 0
    %268 = vmatprep.subr.bf16.mxu0 0
    %269 = vmatpush2.bf16.msra.mxu0 0
    %270 = vmatprep.subr.bf16.mxu0 0
    %271 = vmatpush2.bf16.msra.mxu0 0
    %272 = vmatprep.subr.bf16.mxu0 0
    %273 = vmatpush2.bf16.msra.mxu0 0
    %274 = vmatprep.mubr.bf16.mxu0 0
    %275 = vmatmul.mubr.bf16.gmra.mxu0 %v227
    %v276 = vpop.f32.mrf.mxu0
    %v277 = vadd.f32 %v113, %v276
    %v278 = vpop.f32.mrf.mxu0
    %v279 = vadd.f32 %v117, %v278
    %v280 = vpop.f32.mrf.mxu0
    %v281 = vadd.f32 %v113, %v280
    %v282 = vpop.f32.mrf.mxu0
    %v283 = vadd.f32 %v117, %v282
    %284 = vdwg.mxu0
    %285 = vmatprep.subr.bf16.mxu0 0
    %286 = vmatpush1.bf16.msra.mxu0 0
    %287 = vmatprep.subr.bf16.mxu0 0
    %288 = vmatpush1.bf16.msra.mxu0 0
    %289 = vmatprep.subr.bf16.mxu0 0
    %290 = vmatpush1.bf16.msra.mxu0 0
    %291 = vmatprep.subr.bf16.mxu0 %v240
    %292 = vmatpush1.bf16.msra.mxu0 %v237
    %293 = vmatprep.subr.bf16.mxu0 %v204
    %294 = vmatpush1.bf16.msra.mxu0 %v203
    %295 = vmatprep.subr.bf16.mxu0 %v200
    %296 = vmatpush1.bf16.msra.mxu0 %v199
    %297 = vmatprep.subr.bf16.mxu0 %v196
    %298 = vmatpush1.bf16.msra.mxu0 %v195
    %299 = vmatprep.subr.bf16.mxu0 %v192
    %300 = vmatpush1.bf16.msra.mxu0 %v191
    %301 = vmatprep.subr.bf16.mxu0 0
    %302 = vmatpush2.bf16.msra.mxu0 0
    %303 = vmatprep.subr.bf16.mxu0 0
    %304 = vmatpush2.bf16.msra.mxu0 0
    %305 = vmatprep.subr.bf16.mxu0 0
    %306 = vmatpush2.bf16.msra.mxu0 0
    %307 = vmatprep.subr.bf16.mxu0 0
    %308 = vmatpush2.bf16.msra.mxu0 0
    %309 = vmatprep.subr.bf16.mxu0 0
    %310 = vmatpush2.bf16.msra.mxu0 0
    %311 = vmatprep.subr.bf16.mxu0 0
    %312 = vmatpush2.bf16.msra.mxu0 0
    %313 = vmatprep.subr.bf16.mxu0 0
    %314 = vmatpush2.bf16.msra.mxu0 0
    %315 = vmatprep.subr.bf16.mxu0 0
    %316 = vmatpush2.bf16.msra.mxu0 0
    %317 = vmatprep.mubr.bf16.mxu0 0
    %318 = vmatmul.mubr.bf16.gmra.mxu0 %v227
    %v319 = vpop.f32.mrf.mxu0
    %v320 = vadd.f32 %v121, %v319
    %v321 = vpop.f32.mrf.mxu0
    %v322 = vadd.f32 %v125, %v321
    %v323 = vpop.f32.mrf.mxu0
    %v324 = vadd.f32 %v121, %v323
    %v325 = vpop.f32.mrf.mxu0
    %v326 = vadd.f32 %v125, %v325
    %327 = vdwg.mxu0
    %v328 = vmax.f32 %v277, %v320
    %v329 = vmax.f32 %v279, %v322
    %v330 = vmax.f32 %v281, %v324
    %v331 = vmax.f32 %v283, %v326
    %v332 = vmax.f32 %v328, 0.0
    %v333 = vmax.f32 %v329, 0.0
    %v334 = vmax.f32 %v330, 0.0
    %v335 = vmax.f32 %v331, 0.0
    %v336 = vpack.c.bf16 %v334, %v332
    %v337 = vpack.c.bf16 %v335, %v333
    %v338 = vld [vmem:[#allocation4] sm:$0xff]
    %v339 = vld [vmem:[#allocation4 + $0x8] sm:$0xff]
    %v340 = vld [vmem:[#allocation4 + $0x10] sm:$0xff]
    %v341 = vld [vmem:[#allocation4 + $0x18] sm:$0xff]
    %v342 = vld [vmem:[#allocation4 + $0x20] sm:$0xff]
    %v343 = vld [vmem:[#allocation4 + $0x28] sm:$0xff]
    %v344 = vld [vmem:[#allocation4 + $0x30] sm:$0xff]
    %v345 = vld [vmem:[#allocation4 + $0x38] sm:$0xff]
    %v346 = vld [vmem:[#allocation4 + $0x40] sm:$0xff]
    %v347 = vld [vmem:[#allocation4 + $0x48] sm:$0xff]
    %v348 = vld [vmem:[#allocation4 + $0x50] sm:$0xff]
    %v349 = vld [vmem:[#allocation4 + $0x58] sm:$0xff]
    %v350 = vld [vmem:[#allocation4 + $0x60] sm:$0xff]
    %v351 = vld [vmem:[#allocation4 + $0x68] sm:$0xff]
    %v352 = vld [vmem:[#allocation4 + $0x70] sm:$0xff]
    %v353 = vld [vmem:[#allocation4 + $0x78] sm:$0xff]
    %v354 = vld [vmem:[#allocation4 + $0x80] sm:$0xff]
    %v355 = vld [vmem:[#allocation4 + $0x88] sm:$0xff]
    %v356 = vld [vmem:[#allocation4 + $0x90] sm:$0xff]
    %v357 = vld [vmem:[#allocation4 + $0x98] sm:$0xff]
    %v358 = vld [vmem:[#allocation4 + $0xa0] sm:$0xff]
    %v359 = vld [vmem:[#allocation4 + $0xa8] sm:$0xff]
    %v360 = vld [vmem:[#allocation4 + $0xb0] sm:$0xff]
    %v361 = vld [vmem:[#allocation4 + $0xb8] sm:$0xff]
    %v362 = vld [vmem:[#allocation4 + $0xc0] sm:$0xff]
    %v363 = vld [vmem:[#allocation4 + $0xc8] sm:$0xff]
    %v364 = vld [vmem:[#allocation4 + $0xd0] sm:$0xff]
    %v365 = vld [vmem:[#allocation4 + $0xd8] sm:$0xff]
    %v366 = vld [vmem:[#allocation4 + $0xe0] sm:$0xff]
    %v367 = vld [vmem:[#allocation4 + $0xe8] sm:$0xff]
    %v368 = vld [vmem:[#allocation4 + $0xf0] sm:$0xff]
    %v369 = vld [vmem:[#allocation4 + $0xf8] sm:$0xff]
    %v370 = vld [vmem:[#allocation4 + $0x100] sm:$0xff]
    %v371 = vld [vmem:[#allocation4 + $0x108] sm:$0xff]
    %v372 = vld [vmem:[#allocation4 + $0x110] sm:$0xff]
    %v373 = vld [vmem:[#allocation4 + $0x118] sm:$0xff]
    %v374 = vld [vmem:[#allocation4 + $0x120] sm:$0xff]
    %v375 = vld [vmem:[#allocation4 + $0x128] sm:$0xff]
    %v376 = vld [vmem:[#allocation4 + $0x130] sm:$0xff]
    %v377 = vld [vmem:[#allocation4 + $0x138] sm:$0xff]
    %v378 = vld [vmem:[#allocation4 + $0x140] sm:$0xff]
    %v379 = vld [vmem:[#allocation4 + $0x148] sm:$0xff]
    %v380 = vld [vmem:[#allocation4 + $0x150] sm:$0xff]
    %v381 = vld [vmem:[#allocation4 + $0x158] sm:$0xff]
    %v382 = vld [vmem:[#allocation4 + $0x160] sm:$0xff]
    %v383 = vld [vmem:[#allocation4 + $0x168] sm:$0xff]
    %v384 = vld [vmem:[#allocation4 + $0x170] sm:$0xff]
    %v385 = vld [vmem:[#allocation4 + $0x178] sm:$0xff]
    %v386 = vld [vmem:[#allocation4 + $0x180] sm:$0xff]
    %v387 = vld [vmem:[#allocation4 + $0x188] sm:$0xff]
    %v388 = vld [vmem:[#allocation4 + $0x190] sm:$0xff]
    %v389 = vld [vmem:[#allocation4 + $0x198] sm:$0xff]
    %v390 = vld [vmem:[#allocation4 + $0x1a0] sm:$0xff]
    %v391 = vld [vmem:[#allocation4 + $0x1a8] sm:$0xff]
    %v392 = vld [vmem:[#allocation4 + $0x1b0] sm:$0xff]
    %v393 = vld [vmem:[#allocation4 + $0x1b8] sm:$0xff]
    %v394 = vld [vmem:[#allocation4 + $0x1c0] sm:$0xff]
    %v395 = vld [vmem:[#allocation4 + $0x1c8] sm:$0xff]
    %v396 = vld [vmem:[#allocation4 + $0x1d0] sm:$0xff]
    %v397 = vld [vmem:[#allocation4 + $0x1d8] sm:$0xff]
    %v398 = vld [vmem:[#allocation4 + $0x1e0] sm:$0xff]
    %v399 = vld [vmem:[#allocation4 + $0x1e8] sm:$0xff]
    %v400 = vld [vmem:[#allocation4 + $0x1f0] sm:$0xff]
    %v401 = vld [vmem:[#allocation4 + $0x1f8] sm:$0xff]
    %v402 = vld [vmem:[%s4] sm:$0xf]
    %v404 = vlaneseq
    %v405 = vshrl.u32 %v404, 7
    %v406 = vsub.s32 0, %v405
    %v407 = vrot.slane %v402, %v406
    %v408 = vlaneseq
    %v409 = vshrl.u32 %v408, 7
    %v410 = vsub.s32 1, %v409
    %v411 = vrot.slane %v402, %v410
    %v412 = vlaneseq
    %v413 = vshrl.u32 %v412, 7
    %v414 = vsub.s32 2, %v413
    %v415 = vrot.slane %v402, %v414
    %v416 = vlaneseq
    %v417 = vshrl.u32 %v416, 7
    %v418 = vsub.s32 3, %v417
    %v419 = vrot.slane %v402, %v418
    %v488 = vunpack.c.l.b16 %v338
    %v489 = vunpack.c.h.b16 %v338
    %v490 = vunpack.c.l.b16 %v339
    %v491 = vunpack.c.h.b16 %v339
    %v492 = vunpack.c.l.b16 %v340
    %v493 = vunpack.c.h.b16 %v340
    %v494 = vunpack.c.l.b16 %v341
    %v495 = vunpack.c.h.b16 %v341
    %v496 = vunpack.c.l.b16 %v342
    %v497 = vunpack.c.h.b16 %v342
    %v498 = vunpack.c.l.b16 %v343
    %v499 = vunpack.c.h.b16 %v343
    %v500 = vunpack.c.l.b16 %v344
    %v501 = vunpack.c.h.b16 %v344
    %v502 = vunpack.c.l.b16 %v345
    %v503 = vunpack.c.h.b16 %v345
    %v504 = vunpack.c.l.b16 %v346
    %v505 = vunpack.c.h.b16 %v346
    %v506 = vunpack.c.l.b16 %v347
    %v507 = vunpack.c.h.b16 %v347
    %v508 = vunpack.c.l.b16 %v348
    %v509 = vunpack.c.h.b16 %v348
    %v510 = vunpack.c.l.b16 %v349
    %v511 = vunpack.c.h.b16 %v349
    %v512 = vunpack.c.l.b16 %v350
    %v513 = vunpack.c.h.b16 %v350
    %v514 = vunpack.c.l.b16 %v351
    %v515 = vunpack.c.h.b16 %v351
    %v516 = vunpack.c.l.b16 %v352
    %v517 = vunpack.c.h.b16 %v352
    %v518 = vunpack.c.l.b16 %v353
    %v519 = vunpack.c.h.b16 %v353
    %v520 = vunpack.c.l.b16 %v354
    %v521 = vunpack.c.h.b16 %v354
    %v522 = vunpack.c.l.b16 %v355
    %v523 = vunpack.c.h.b16 %v355
    %v524 = vunpack.c.l.b16 %v356
    %v525 = vunpack.c.h.b16 %v356
    %v526 = vunpack.c.l.b16 %v357
    %v527 = vunpack.c.h.b16 %v357
    %v528 = vunpack.c.l.b16 %v358
    %v529 = vunpack.c.h.b16 %v358
    %v530 = vunpack.c.l.b16 %v359
    %v531 = vunpack.c.h.b16 %v359
    %v532 = vunpack.c.l.b16 %v360
    %v533 = vunpack.c.h.b16 %v360
    %v534 = vunpack.c.l.b16 %v361
    %v535 = vunpack.c.h.b16 %v361
    %v536 = vunpack.c.l.b16 %v362
    %v537 = vunpack.c.h.b16 %v362
    %v538 = vunpack.c.l.b16 %v363
    %v539 = vunpack.c.h.b16 %v363
    %v540 = vunpack.c.l.b16 %v364
    %v541 = vunpack.c.h.b16 %v364
    %v542 = vunpack.c.l.b16 %v365
    %v543 = vunpack.c.h.b16 %v365
    %v544 = vunpack.c.l.b16 %v366
    %v545 = vunpack.c.h.b16 %v366
    %v546 = vunpack.c.l.b16 %v367
    %v547 = vunpack.c.h.b16 %v367
    %v548 = vunpack.c.l.b16 %v368
    %v549 = vunpack.c.h.b16 %v368
    %v550 = vunpack.c.l.b16 %v369
    %v551 = vunpack.c.h.b16 %v369
    %v552 = vunpack.c.l.b16 %v370
    %v553 = vunpack.c.h.b16 %v370
    %v554 = vunpack.c.l.b16 %v371
    %v555 = vunpack.c.h.b16 %v371
    %v556 = vunpack.c.l.b16 %v372
    %v557 = vunpack.c.h.b16 %v372
    %v558 = vunpack.c.l.b16 %v373
    %v559 = vunpack.c.h.b16 %v373
    %v560 = vunpack.c.l.b16 %v374
    %v561 = vunpack.c.h.b16 %v374
    %v562 = vunpack.c.l.b16 %v375
    %v563 = vunpack.c.h.b16 %v375
    %v564 = vunpack.c.l.b16 %v376
    %v565 = vunpack.c.h.b16 %v376
    %v566 = vunpack.c.l.b16 %v377
    %v567 = vunpack.c.h.b16 %v377
    %v568 = vunpack.c.l.b16 %v378
    %v569 = vunpack.c.h.b16 %v378
    %v570 = vunpack.c.l.b16 %v379
    %v571 = vunpack.c.h.b16 %v379
    %v572 = vunpack.c.l.b16 %v380
    %v573 = vunpack.c.h.b16 %v380
    %v574 = vunpack.c.l.b16 %v381
    %v575 = vunpack.c.h.b16 %v381
    %v576 = vunpack.c.l.b16 %v382
    %v577 = vunpack.c.h.b16 %v382
    %v578 = vunpack.c.l.b16 %v383
    %v579 = vunpack.c.h.b16 %v383
    %v580 = vunpack.c.l.b16 %v384
    %v581 = vunpack.c.h.b16 %v384
    %v582 = vunpack.c.l.b16 %v385
    %v583 = vunpack.c.h.b16 %v385
    %v584 = vunpack.c.l.b16 %v386
    %v585 = vunpack.c.h.b16 %v386
    %v586 = vunpack.c.l.b16 %v387
    %v587 = vunpack.c.h.b16 %v387
    %v588 = vunpack.c.l.b16 %v388
    %v589 = vunpack.c.h.b16 %v388
    %v590 = vunpack.c.l.b16 %v389
    %v591 = vunpack.c.h.b16 %v389
    %v592 = vunpack.c.l.b16 %v390
    %v593 = vunpack.c.h.b16 %v390
    %v594 = vunpack.c.l.b16 %v391
    %v595 = vunpack.c.h.b16 %v391
    %v596 = vunpack.c.l.b16 %v392
    %v597 = vunpack.c.h.b16 %v392
    %v598 = vunpack.c.l.b16 %v393
    %v599 = vunpack.c.h.b16 %v393
    %v600 = vunpack.c.l.b16 %v394
    %v601 = vunpack.c.h.b16 %v394
    %v602 = vunpack.c.l.b16 %v395
    %v603 = vunpack.c.h.b16 %v395
    %v604 = vunpack.c.l.b16 %v396
    %v605 = vunpack.c.h.b16 %v396
    %v606 = vunpack.c.l.b16 %v397
    %v607 = vunpack.c.h.b16 %v397
    %v608 = vunpack.c.l.b16 %v398
    %v609 = vunpack.c.h.b16 %v398
    %v610 = vunpack.c.l.b16 %v399
    %v611 = vunpack.c.h.b16 %v399
    %v612 = vunpack.c.l.b16 %v400
    %v613 = vunpack.c.h.b16 %v400
    %v614 = vunpack.c.l.b16 %v401
    %v615 = vunpack.c.h.b16 %v401
    %v616 = vpack.c.b16 %v492, %v488
    %v617 = vpack.c.b16 %v493, %v489
    %v618 = vpack.c.b16 %v494, %v490
    %v619 = vpack.c.b16 %v495, %v491
    %v620 = vpack.c.b16 %v500, %v496
    %v621 = vpack.c.b16 %v501, %v497
    %v622 = vpack.c.b16 %v502, %v498
    %v623 = vpack.c.b16 %v503, %v499
    %v624 = vpack.c.b16 %v508, %v504
    %v625 = vpack.c.b16 %v509, %v505
    %v626 = vpack.c.b16 %v510, %v506
    %v627 = vpack.c.b16 %v511, %v507
    %v628 = vpack.c.b16 %v516, %v512
    %v629 = vpack.c.b16 %v517, %v513
    %v630 = vpack.c.b16 %v518, %v514
    %v631 = vpack.c.b16 %v519, %v515
    %v632 = vpack.c.b16 %v524, %v520
    %v633 = vpack.c.b16 %v525, %v521
    %v634 = vpack.c.b16 %v526, %v522
    %v635 = vpack.c.b16 %v527, %v523
    %v636 = vpack.c.b16 %v532, %v528
    %v637 = vpack.c.b16 %v533, %v529
    %v638 = vpack.c.b16 %v534, %v530
    %v639 = vpack.c.b16 %v535, %v531
    %v640 = vpack.c.b16 %v540, %v536
    %v641 = vpack.c.b16 %v541, %v537
    %v642 = vpack.c.b16 %v542, %v538
    %v643 = vpack.c.b16 %v543, %v539
    %v644 = vpack.c.b16 %v548, %v544
    %v645 = vpack.c.b16 %v549, %v545
    %v646 = vpack.c.b16 %v550, %v546
    %v647 = vpack.c.b16 %v551, %v547
    %v648 = vpack.c.b16 %v556, %v552
    %v649 = vpack.c.b16 %v557, %v553
    %v650 = vpack.c.b16 %v558, %v554
    %v651 = vpack.c.b16 %v559, %v555
    %v652 = vpack.c.b16 %v564, %v560
    %v653 = vpack.c.b16 %v565, %v561
    %v654 = vpack.c.b16 %v566, %v562
    %v655 = vpack.c.b16 %v567, %v563
    %v656 = vpack.c.b16 %v572, %v568
    %v657 = vpack.c.b16 %v573, %v569
    %v658 = vpack.c.b16 %v574, %v570
    %v659 = vpack.c.b16 %v575, %v571
    %v660 = vpack.c.b16 %v580, %v576
    %v661 = vpack.c.b16 %v581, %v577
    %v662 = vpack.c.b16 %v582, %v578
    %v663 = vpack.c.b16 %v583, %v579
    %v664 = vpack.c.b16 %v588, %v584
    %v665 = vpack.c.b16 %v589, %v585
    %v666 = vpack.c.b16 %v590, %v586
    %v667 = vpack.c.b16 %v591, %v587
    %v668 = vpack.c.b16 %v596, %v592
    %v669 = vpack.c.b16 %v597, %v593
    %v670 = vpack.c.b16 %v598, %v594
    %v671 = vpack.c.b16 %v599, %v595
    %v672 = vpack.c.b16 %v604, %v600
    %v673 = vpack.c.b16 %v605, %v601
    %v674 = vpack.c.b16 %v606, %v602
    %v675 = vpack.c.b16 %v607, %v603
    %v676 = vpack.c.b16 %v612, %v608
    %v677 = vpack.c.b16 %v613, %v609
    %v678 = vpack.c.b16 %v614, %v610
    %v679 = vpack.c.b16 %v615, %v611
    %744 = vmatprep.subr.bf16.mxu0 %v645
    %745 = vmatpush1.bf16.msra.mxu0 %v644
    %746 = vmatprep.subr.bf16.mxu0 %v641
    %747 = vmatpush1.bf16.msra.mxu0 %v640
    %748 = vmatprep.subr.bf16.mxu0 %v637
    %749 = vmatpush1.bf16.msra.mxu0 %v636
    %750 = vmatprep.subr.bf16.mxu0 %v633
    %751 = vmatpush1.bf16.msra.mxu0 %v632
    %752 = vmatprep.subr.bf16.mxu0 %v629
    %753 = vmatpush1.bf16.msra.mxu0 %v628
    %754 = vmatprep.subr.bf16.mxu0 %v625
    %755 = vmatpush1.bf16.msra.mxu0 %v624
    %756 = vmatprep.subr.bf16.mxu0 %v621
    %757 = vmatpush1.bf16.msra.mxu0 %v620
    %758 = vmatprep.subr.bf16.mxu0 %v617
    %759 = vmatpush1.bf16.msra.mxu0 %v616
    %760 = vmatprep.subr.bf16.mxu0 %v677
    %761 = vmatpush2.bf16.msra.mxu0 %v676
    %762 = vmatprep.subr.bf16.mxu0 %v673
    %763 = vmatpush2.bf16.msra.mxu0 %v672
    %764 = vmatprep.subr.bf16.mxu0 %v669
    %765 = vmatpush2.bf16.msra.mxu0 %v668
    %766 = vmatprep.subr.bf16.mxu0 %v665
    %767 = vmatpush2.bf16.msra.mxu0 %v664
    %768 = vmatprep.subr.bf16.mxu0 %v661
    %769 = vmatpush2.bf16.msra.mxu0 %v660
    %770 = vmatprep.subr.bf16.mxu0 %v657
    %771 = vmatpush2.bf16.msra.mxu0 %v656
    %772 = vmatprep.subr.bf16.mxu0 %v653
    %773 = vmatpush2.bf16.msra.mxu0 %v652
    %774 = vmatprep.subr.bf16.mxu0 %v649
    %775 = vmatpush2.bf16.msra.mxu0 %v648
    %776 = vmatprep.mubr.bf16.mxu0 %v337
    %777 = vmatmul.mubr.bf16.gmra.mxu0 %v336
    %v778 = vpop.f32.mrf.mxu0
    %v779 = vadd.f32 %v407, %v778
    %v780 = vpop.f32.mrf.mxu0
    %v781 = vadd.f32 %v411, %v780
    %v782 = vpop.f32.mrf.mxu0
    %v783 = vadd.f32 %v407, %v782
    %v784 = vpop.f32.mrf.mxu0
    %v785 = vadd.f32 %v411, %v784
    %786 = vdwg.mxu0
    %787 = vmatprep.subr.bf16.mxu0 %v647
    %788 = vmatpush1.bf16.msra.mxu0 %v646
    %789 = vmatprep.subr.bf16.mxu0 %v643
    %790 = vmatpush1.bf16.msra.mxu0 %v642
    %791 = vmatprep.subr.bf16.mxu0 %v639
    %792 = vmatpush1.bf16.msra.mxu0 %v638
    %793 = vmatprep.subr.bf16.mxu0 %v635
    %794 = vmatpush1.bf16.msra.mxu0 %v634
    %795 = vmatprep.subr.bf16.mxu0 %v631
    %796 = vmatpush1.bf16.msra.mxu0 %v630
    %797 = vmatprep.subr.bf16.mxu0 %v627
    %798 = vmatpush1.bf16.msra.mxu0 %v626
    %799 = vmatprep.subr.bf16.mxu0 %v623
    %800 = vmatpush1.bf16.msra.mxu0 %v622
    %801 = vmatprep.subr.bf16.mxu0 %v619
    %802 = vmatpush1.bf16.msra.mxu0 %v618
    %803 = vmatprep.subr.bf16.mxu0 %v679
    %804 = vmatpush2.bf16.msra.mxu0 %v678
    %805 = vmatprep.subr.bf16.mxu0 %v675
    %806 = vmatpush2.bf16.msra.mxu0 %v674
    %807 = vmatprep.subr.bf16.mxu0 %v671
    %808 = vmatpush2.bf16.msra.mxu0 %v670
    %809 = vmatprep.subr.bf16.mxu0 %v667
    %810 = vmatpush2.bf16.msra.mxu0 %v666
    %811 = vmatprep.subr.bf16.mxu0 %v663
    %812 = vmatpush2.bf16.msra.mxu0 %v662
    %813 = vmatprep.subr.bf16.mxu0 %v659
    %814 = vmatpush2.bf16.msra.mxu0 %v658
    %815 = vmatprep.subr.bf16.mxu0 %v655
    %816 = vmatpush2.bf16.msra.mxu0 %v654
    %817 = vmatprep.subr.bf16.mxu0 %v651
    %818 = vmatpush2.bf16.msra.mxu0 %v650
    %819 = vmatprep.mubr.bf16.mxu0 %v337
    %820 = vmatmul.mubr.bf16.gmra.mxu0 %v336
    %v821 = vpop.f32.mrf.mxu0
    %v822 = vadd.f32 %v415, %v821
    %v823 = vpop.f32.mrf.mxu0
    %v824 = vadd.f32 %v419, %v823
    %v825 = vpop.f32.mrf.mxu0
    %v826 = vadd.f32 %v415, %v825
    %v827 = vpop.f32.mrf.mxu0
    %v828 = vadd.f32 %v419, %v827
    %829 = vdwg.mxu0
    %v830 = vmax.f32 %v779, %v822
    %v831 = vmax.f32 %v781, %v824
    %v832 = vmax.f32 %v783, %v826
    %v833 = vmax.f32 %v785, %v828
    %v834 = vmax.f32 %v830, 0.0
    %v835 = vmax.f32 %v831, 0.0
    %v836 = vmax.f32 %v832, 0.0
    %v837 = vmax.f32 %v833, 0.0
    %v838 = vpack.c.bf16 %v836, %v834
    %v839 = vpack.c.bf16 %v837, %v835
    %v840 = vld [vmem:[#allocation6] sm:$0xf]
    %v841 = vld [vmem:[#allocation6 + $0x4] sm:$0xf]
    %v842 = vld [vmem:[#allocation6 + $0x8] sm:$0xf]
    %v843 = vld [vmem:[#allocation6 + $0xc] sm:$0xf]
    %v844 = vld [vmem:[#allocation6 + $0x10] sm:$0xf]
    %v845 = vld [vmem:[#allocation6 + $0x14] sm:$0xf]
    %v846 = vld [vmem:[#allocation6 + $0x18] sm:$0xf]
    %v847 = vld [vmem:[#allocation6 + $0x1c] sm:$0xf]
    %v848 = vld [vmem:[#allocation6 + $0x20] sm:$0xf]
    %v849 = vld [vmem:[#allocation6 + $0x24] sm:$0xf]
    %v850 = vld [vmem:[#allocation6 + $0x28] sm:$0xf]
    %v851 = vld [vmem:[#allocation6 + $0x2c] sm:$0xf]
    %v852 = vld [vmem:[#allocation6 + $0x30] sm:$0xf]
    %v853 = vld [vmem:[#allocation6 + $0x34] sm:$0xf]
    %v854 = vld [vmem:[#allocation6 + $0x38] sm:$0xf]
    %v855 = vld [vmem:[#allocation6 + $0x3c] sm:$0xf]
    %v856 = vld [vmem:[#allocation6 + $0x40] sm:$0xf]
    %v857 = vld [vmem:[#allocation6 + $0x44] sm:$0xf]
    %v858 = vld [vmem:[#allocation6 + $0x48] sm:$0xf]
    %v859 = vld [vmem:[#allocation6 + $0x4c] sm:$0xf]
    %v860 = vld [vmem:[#allocation6 + $0x50] sm:$0xf]
    %v861 = vld [vmem:[#allocation6 + $0x54] sm:$0xf]
    %v862 = vld [vmem:[#allocation6 + $0x58] sm:$0xf]
    %v863 = vld [vmem:[#allocation6 + $0x5c] sm:$0xf]
    %v864 = vld [vmem:[#allocation6 + $0x60] sm:$0xf]
    %v865 = vld [vmem:[#allocation6 + $0x64] sm:$0xf]
    %v866 = vld [vmem:[#allocation6 + $0x68] sm:$0xf]
    %v867 = vld [vmem:[#allocation6 + $0x6c] sm:$0xf]
    %v868 = vld [vmem:[#allocation6 + $0x70] sm:$0xf]
    %v869 = vld [vmem:[#allocation6 + $0x74] sm:$0xf]
    %v870 = vld [vmem:[#allocation6 + $0x78] sm:$0xf]
    %v871 = vld [vmem:[#allocation6 + $0x7c] sm:$0xf]
    %v872 = vld [vmem:[%s6] sm:$0x1]
    %v874 = vlaneseq
    %v875 = vshrl.u32 %v874, 7
    %v876 = vsub.s32 0, %v875
    %v877 = vrot.slane %v872, %v876
    %v911 = vunpack.c.l.b16 %v840
    %v912 = vunpack.c.l.b16 %v841
    %v913 = vunpack.c.l.b16 %v842
    %v914 = vunpack.c.l.b16 %v843
    %v915 = vunpack.c.l.b16 %v844
    %v916 = vunpack.c.l.b16 %v845
    %v917 = vunpack.c.l.b16 %v846
    %v918 = vunpack.c.l.b16 %v847
    %v919 = vunpack.c.l.b16 %v848
    %v920 = vunpack.c.l.b16 %v849
    %v921 = vunpack.c.l.b16 %v850
    %v922 = vunpack.c.l.b16 %v851
    %v923 = vunpack.c.l.b16 %v852
    %v924 = vunpack.c.l.b16 %v853
    %v925 = vunpack.c.l.b16 %v854
    %v926 = vunpack.c.l.b16 %v855
    %v927 = vunpack.c.l.b16 %v856
    %v928 = vunpack.c.l.b16 %v857
    %v929 = vunpack.c.l.b16 %v858
    %v930 = vunpack.c.l.b16 %v859
    %v931 = vunpack.c.l.b16 %v860
    %v932 = vunpack.c.l.b16 %v861
    %v933 = vunpack.c.l.b16 %v862
    %v934 = vunpack.c.l.b16 %v863
    %v935 = vunpack.c.l.b16 %v864
    %v936 = vunpack.c.l.b16 %v865
    %v937 = vunpack.c.l.b16 %v866
    %v938 = vunpack.c.l.b16 %v867
    %v939 = vunpack.c.l.b16 %v868
    %v940 = vunpack.c.l.b16 %v869
    %v941 = vunpack.c.l.b16 %v870
    %v942 = vunpack.c.l.b16 %v871
    %v943 = vpack.c.b16 %v912, %v911
    %v944 = vpack.c.b16 %v914, %v913
    %v945 = vpack.c.b16 %v916, %v915
    %v946 = vpack.c.b16 %v918, %v917
    %v947 = vpack.c.b16 %v920, %v919
    %v948 = vpack.c.b16 %v922, %v921
    %v949 = vpack.c.b16 %v924, %v923
    %v950 = vpack.c.b16 %v926, %v925
    %v951 = vpack.c.b16 %v928, %v927
    %v952 = vpack.c.b16 %v930, %v929
    %v953 = vpack.c.b16 %v932, %v931
    %v954 = vpack.c.b16 %v934, %v933
    %v955 = vpack.c.b16 %v936, %v935
    %v956 = vpack.c.b16 %v938, %v937
    %v957 = vpack.c.b16 %v940, %v939
    %v958 = vpack.c.b16 %v942, %v941
    %975 = vmatprep.subr.bf16.mxu0 0
    %976 = vmatpush1.bf16.msra.mxu0 %v950
    %977 = vmatprep.subr.bf16.mxu0 0
    %978 = vmatpush1.bf16.msra.mxu0 %v949
    %979 = vmatprep.subr.bf16.mxu0 0
    %980 = vmatpush1.bf16.msra.mxu0 %v948
    %981 = vmatprep.subr.bf16.mxu0 0
    %982 = vmatpush1.bf16.msra.mxu0 %v947
    %983 = vmatprep.subr.bf16.mxu0 0
    %984 = vmatpush1.bf16.msra.mxu0 %v946
    %985 = vmatprep.subr.bf16.mxu0 0
    %986 = vmatpush1.bf16.msra.mxu0 %v945
    %987 = vmatprep.subr.bf16.mxu0 0
    %988 = vmatpush1.bf16.msra.mxu0 %v944
    %989 = vmatprep.subr.bf16.mxu0 0
    %990 = vmatpush1.bf16.msra.mxu0 %v943
    %991 = vmatprep.subr.bf16.mxu0 0
    %992 = vmatpush2.bf16.msra.mxu0 %v958
    %993 = vmatprep.subr.bf16.mxu0 0
    %994 = vmatpush2.bf16.msra.mxu0 %v957
    %995 = vmatprep.subr.bf16.mxu0 0
    %996 = vmatpush2.bf16.msra.mxu0 %v956
    %997 = vmatprep.subr.bf16.mxu0 0
    %998 = vmatpush2.bf16.msra.mxu0 %v955
    %999 = vmatprep.subr.bf16.mxu0 0
    %1000 = vmatpush2.bf16.msra.mxu0 %v954
    %1001 = vmatprep.subr.bf16.mxu0 0
    %1002 = vmatpush2.bf16.msra.mxu0 %v953
    %1003 = vmatprep.subr.bf16.mxu0 0
    %1004 = vmatpush2.bf16.msra.mxu0 %v952
    %1005 = vmatprep.subr.bf16.mxu0 0
    %1006 = vmatpush2.bf16.msra.mxu0 %v951
    %1007 = vmatprep.mubr.bf16.mxu0 %v839
    %1008 = vmatmul.mubr.bf16.gmra.mxu0 %v838
    %v1009 = vpop.f32.mrf.mxu0
    %v1010 = vadd.f32 %v877, %v1009
    %v1011 = vpop.f32.mrf.mxu0
    %v1012 = vpop.f32.mrf.mxu0
    %v1013 = vadd.f32 %v877, %v1012
    %v1014 = vpop.f32.mrf.mxu0
    %1015 = vdwg.mxu0
    %v1016 = vmax.f32 %v1010, 0.0
    %v1017 = vmax.f32 %v1013, 0.0
    %v1018 = vpack.c.bf16 %v1017, %v1016
    %v1019 = vld [vmem:[#allocation7] sm:$0xf]
    %v1020 = vld [vmem:[#allocation7 + $0x4] sm:$0xf]
    %v1021 = vld [vmem:[#allocation7 + $0x8] sm:$0xf]
    %v1022 = vld [vmem:[#allocation7 + $0xc] sm:$0xf]
    %v1023 = vld [vmem:[#allocation7 + $0x10] sm:$0xf]
    %v1024 = vld [vmem:[#allocation7 + $0x14] sm:$0xf]
    %v1025 = vld [vmem:[#allocation7 + $0x18] sm:$0xf]
    %v1026 = vld [vmem:[#allocation7 + $0x1c] sm:$0xf]
    %v1027 = vld [vmem:[#allocation7 + $0x20] sm:$0xf]
    %v1028 = vld [vmem:[#allocation7 + $0x24] sm:$0xf]
    %v1029 = vld [vmem:[#allocation7 + $0x28] sm:$0xf]
    %v1030 = vld [vmem:[#allocation7 + $0x2c] sm:$0xf]
    %v1031 = vld [vmem:[#allocation7 + $0x30] sm:$0xf]
    %v1032 = vld [vmem:[#allocation7 + $0x34] sm:$0xf]
    %v1033 = vld [vmem:[#allocation7 + $0x38] sm:$0xf]
    %v1034 = vld [vmem:[#allocation7 + $0x3c] sm:$0xf]
    %v1035 = vld [vmem:[%s8] sm:$0x1]
    %v1037 = vlaneseq
    %v1038 = vshrl.u32 %v1037, 7
    %v1039 = vsub.s32 0, %v1038
    %v1040 = vrot.slane %v1035, %v1039
    %v1058 = vunpack.c.l.b16 %v1019
    %v1059 = vunpack.c.l.b16 %v1020
    %v1060 = vunpack.c.l.b16 %v1021
    %v1061 = vunpack.c.l.b16 %v1022
    %v1062 = vunpack.c.l.b16 %v1023
    %v1063 = vunpack.c.l.b16 %v1024
    %v1064 = vunpack.c.l.b16 %v1025
    %v1065 = vunpack.c.l.b16 %v1026
    %v1066 = vunpack.c.l.b16 %v1027
    %v1067 = vunpack.c.l.b16 %v1028
    %v1068 = vunpack.c.l.b16 %v1029
    %v1069 = vunpack.c.l.b16 %v1030
    %v1070 = vunpack.c.l.b16 %v1031
    %v1071 = vunpack.c.l.b16 %v1032
    %v1072 = vunpack.c.l.b16 %v1033
    %v1073 = vunpack.c.l.b16 %v1034
    %v1074 = vpack.c.b16 %v1059, %v1058
    %v1075 = vpack.c.b16 %v1061, %v1060
    %v1076 = vpack.c.b16 %v1063, %v1062
    %v1077 = vpack.c.b16 %v1065, %v1064
    %v1078 = vpack.c.b16 %v1067, %v1066
    %v1079 = vpack.c.b16 %v1069, %v1068
    %v1080 = vpack.c.b16 %v1071, %v1070
    %v1081 = vpack.c.b16 %v1073, %v1072
    %1090 = vmatprep.subr.bf16.mxu0 0
    %1091 = vmatpush1.bf16.msra.mxu0 %v1081
    %1092 = vmatprep.subr.bf16.mxu0 0
    %1093 = vmatpush1.bf16.msra.mxu0 %v1080
    %1094 = vmatprep.subr.bf16.mxu0 0
    %1095 = vmatpush1.bf16.msra.mxu0 %v1079
    %1096 = vmatprep.subr.bf16.mxu0 0
    %1097 = vmatpush1.bf16.msra.mxu0 %v1078
    %1098 = vmatprep.subr.bf16.mxu0 0
    %1099 = vmatpush1.bf16.msra.mxu0 %v1077
    %1100 = vmatprep.subr.bf16.mxu0 0
    %1101 = vmatpush1.bf16.msra.mxu0 %v1076
    %1102 = vmatprep.subr.bf16.mxu0 0
    %1103 = vmatpush1.bf16.msra.mxu0 %v1075
    %1104 = vmatprep.subr.bf16.mxu0 0
    %1105 = vmatpush1.bf16.msra.mxu0 %v1074
    %1106 = vmatprep.subr.bf16.mxu0 0
    %1107 = vmatpush2.bf16.msra.mxu0 0
    %1108 = vmatprep.subr.bf16.mxu0 0
    %1109 = vmatpush2.bf16.msra.mxu0 0
    %1110 = vmatprep.subr.bf16.mxu0 0
    %1111 = vmatpush2.bf16.msra.mxu0 0
    %1112 = vmatprep.subr.bf16.mxu0 0
    %1113 = vmatpush2.bf16.msra.mxu0 0
    %1114 = vmatprep.subr.bf16.mxu0 0
    %1115 = vmatpush2.bf16.msra.mxu0 0
    %1116 = vmatprep.subr.bf16.mxu0 0
    %1117 = vmatpush2.bf16.msra.mxu0 0
    %1118 = vmatprep.subr.bf16.mxu0 0
    %1119 = vmatpush2.bf16.msra.mxu0 0
    %1120 = vmatprep.subr.bf16.mxu0 0
    %1121 = vmatpush2.bf16.msra.mxu0 0
    %1122 = vmatprep.mubr.bf16.mxu0 0
    %1123 = vmatmul.mubr.bf16.gmra.mxu0 %v1018
    %v1124 = vpop.f32.mrf.mxu0
    %v1125 = vadd.f32 %v1040, %v1124
    %v1126 = vpop.f32.mrf.mxu0
    %v1127 = vpop.f32.mrf.mxu0
    %v1128 = vadd.f32 %v1040, %v1127
    %v1129 = vpop.f32.mrf.mxu0
    %1130 = vdwg.mxu0
    %v1131 = vpack.c.bf16 %v1128, %v1125
    %v1133 = vunpack.c.l.b16 %v1131
    %v1134 = vunpack.c.h.b16 %v1131
    %v1135 = vpack.c.b16 %v1133, %v1133
    %v1136 = vpack.c.b16 %v1134, %v1134
    %1139 = vst [vmem:[%s9] sm:$0xf] %v1135
    %1140 = vst [vmem:[%s9 + $0x4] sm:$0xf] %v1136
    // Predicated region
    $region54: #{forward.1} parent=1 // pred_check
      _
    $region55: #{forward.1} parent=1 // pred_check_branch
      %1142 = sbr.rel (0) target = $region57
    $region56: #{forward.1} parent=1 // pred_region
      _
    $region57: #{forward.1} parent=1 // pred_fallthru
      _
    // Predicated region
    $region58: #{forward.1} parent=1 // pred_check
      _
    $region59: #{forward.1} parent=1 // pred_check_branch
      %1144 = sbr.rel (0) target = $region61
    $region60: #{forward.1} parent=1 // pred_region
      _
    $region61: #{forward.1} parent=1 // pred_fallthru
      _
    %1145 = vsyncpa [#allocation3], 1
    %1146 = vsyncpa [#allocation5], 1
    %1147 = vsyncpa [#allocation8], 1

</llo_original>
